<compile_context>
chip_gen: v7x
topology: tpu7x:2x2x1
jax: 0.10.0
libtpu: 0.0.40
codegen_flags: <defaults>
</compile_context>

<pallas_src>
import numpy as np
import jax
import jax.numpy as jnp
from jax.experimental import pallas as pl
from jax.experimental.pallas import tpu as pltpu


def _choose_layout(nc, h, w, itemsize):
    """Pick a lane-dense flattening (R, L) and a block row count.

    L is a multiple of 2*W (one Haar row-pair chunk) so every 2x2 block lives
    inside a single flattened row; L is grown toward ~1024 lanes while it
    still divides the total element count.  block_rows is a divisor of R that
    is a multiple of 8 (sublane rule) or equal to R, sized so each input block
    is around <= 1 MiB (pipeline-friendly, safe on v7x's smaller VMEM).
    """
    total = nc * h * w
    L = 2 * w
    while L < 1024 and total % (2 * L) == 0:
        L *= 2
    R = total // L

    target_bytes = 1 << 20                      # ~1 MiB per input block
    bytes_per_row = L * max(int(itemsize), 4)   # f32 scratch dominates for bf16
    cap = max(1, target_bytes // bytes_per_row)
    if R <= cap:
        block_rows = R
    else:
        block_rows = None
        d = (cap // 8) * 8
        while d >= 8:
            if R % d == 0:
                block_rows = d
                break
            d -= 8
        if block_rows is None:
            block_rows = R  # rare awkward shapes: fall back to a single block
    return L, R, block_rows


def _make_detail_kernel(w, lc):
    def kernel(x_ref, y_ref, m_ref, o_ref, e_ref):
        # e = x - y, upcast in-register.  The Haar DWT is linear, so one
        # transform of the difference replaces two transforms + a subtraction.
        e_ref[...] = x_ref[...].astype(jnp.float32) - y_ref[...].astype(jnp.float32)

        # 2x2 Haar stencil: the neighbours of element k are k+1 (next column),
        # k+w (next row) and k+w+1 -- contiguous, statically-offset slices.
        a = e_ref[:, pl.ds(0, lc)]
        b = e_ref[:, pl.ds(1, lc)]
        c = e_ref[:, pl.ds(w, lc)]
        d = e_ref[:, pl.ds(w + 1, lc)]

        lh = (b + d) - (a + c)
        hl = (c + d) - (a + b)
        hh = (a + d) - (b + c)
        sq = lh * lh + hl * hl + hh * hh

        # Host-precomputed mask: nonzero only at the top-left corner of each
        # 2x2 block, already carrying the 0.25 subband normalisation.
        s = jnp.sum(sq * m_ref[...])

        # Per-grid-step partial sum, written lane-dense (1, 8, 128); reduced
        # in the wrapper so the grid axis stays fully parallel (v7x megacore).
        o_ref[...] = jnp.zeros_like(o_ref) + s

    return kernel


def detail_loss(x, y):
    """Pallas implementation of detailLoss.forward(x, y) for NCHW inputs."""
    assert x.shape == y.shape
    n, ch, h, w = x.shape
    assert h % 2 == 0 and w % 2 == 0, "Haar DWT needs even spatial dims"
    nc = n * ch

    itemsize = jnp.dtype(x.dtype).itemsize
    L, R, block_rows = _choose_layout(nc, h, w, itemsize)
    lc = L - w - 1
    grid_n = R // block_rows

    # Row-major flattening to a lane-dense (R, L) slab (no dtype cast here:
    # narrower inputs are streamed at native width and upcast in-kernel).
    xf = x.reshape(R, L)
    yf = y.reshape(R, L)

    # Mask over lane index k: valid iff k is even and (k mod 2W) < W, i.e. the
    # top-left element of every 2x2 block; folds in the 0.25 normalisation.
    k = np.arange(lc)
    mask = np.where((k % 2 == 0) & ((k % (2 * w)) < w), 0.25, 0.0)
    mask = jnp.asarray(mask.astype(np.float32).reshape(1, lc))

    kernel = _make_detail_kernel(w, lc)

    partials = pl.pallas_call(
        kernel,
        out_shape=jax.ShapeDtypeStruct((grid_n, 8, 128), jnp.float32),
        grid_spec=pltpu.PrefetchScalarGridSpec(
            num_scalar_prefetch=0,
            grid=(grid_n,),
            in_specs=[
                pl.BlockSpec((block_rows, L), lambda i: (i, 0)),  # x slab
                pl.BlockSpec((block_rows, L), lambda i: (i, 0)),  # y slab
                pl.BlockSpec((1, lc), lambda i: (0, 0)),          # stencil mask
            ],
            out_specs=pl.BlockSpec((1, 8, 128), lambda i: (i, 0, 0)),
            scratch_shapes=[pltpu.VMEM((block_rows, L), jnp.float32)],
        ),
        compiler_params=pltpu.CompilerParams(
            dimension_semantics=("parallel",)),
    )(xf, yf, mask)

    # Each nn.MSELoss is a mean over N*C*(H/2)*(W/2) elements; the three
    # subbands share the denominator, so divide the accumulated sum once.
    n_elem = jnp.float32(nc * (h // 2) * (w // 2))
    return jnp.sum(partials[:, 0, 0]) / n_elem


def _ref_detail_loss(x, y):
    """Pure-JAX reference (stride-2 Haar formulation) for verification."""
    def subbands(z):
        a = z[:, :, 0::2, 0::2]
        b = z[:, :, 0::2, 1::2]
        c = z[:, :, 1::2, 0::2]
        d = z[:, :, 1::2, 1::2]
        lh = (b + d - a - c) * 0.5   # low rows, high cols
        hl = (c + d - a - b) * 0.5   # high rows, low cols
        hh = (a - b - c + d) * 0.5   # high rows, high cols
        return lh, hl, hh

    lhx, hlx, hhx = subbands(x)
    lhy, hly, hhy = subbands(y)
    return (jnp.mean((lhx - lhy) ** 2)
            + jnp.mean((hlx - hly) ** 2)
            + jnp.mean((hhx - hhy) ** 2))


if __name__ == "__main__":
    key = jax.random.PRNGKey(0)

    # Primary case (matches the module's typical NCHW usage).
    kx, ky = jax.random.split(key)
    N, C, H, W = 2, 4, 16, 16
    x = jax.random.normal(kx, (N, C, H, W), jnp.float32)
    y = jax.random.normal(ky, (N, C, H, W), jnp.float32)

    loss = jax.block_until_ready(detail_loss(x, y))
    ref = _ref_detail_loss(x, y)
    assert np.allclose(np.asarray(loss), np.asarray(ref), rtol=1e-5, atol=1e-5), (
        float(loss), float(ref))

    # Secondary case: non-power-of-two width exercises the generic layout picker.
    kx2, ky2 = jax.random.split(jax.random.PRNGKey(1))
    x2 = jax.random.normal(kx2, (1, 3, 8, 24), jnp.float32)
    y2 = jax.random.normal(ky2, (1, 3, 8, 24), jnp.float32)
    loss2 = jax.block_until_ready(detail_loss(x2, y2))
    ref2 = _ref_detail_loss(x2, y2)
    assert np.allclose(np.asarray(loss2), np.asarray(ref2), rtol=1e-5, atol=1e-5), (
        float(loss2), float(ref2))

    print("KERNEL_OK")
</pallas_src>

<mosaic_0001>
module attributes {stable_mosaic.version = 11 : i64} {
  func.func @kernel(%arg0: i32, %arg1: memref<2x1024xf32, #tpu.memory_space<vmem>>, %arg2: memref<2x1024xf32, #tpu.memory_space<vmem>>, %arg3: memref<1x1007xf32, #tpu.memory_space<vmem>>, %arg4: memref<1x8x128xf32, #tpu.memory_space<vmem>>, %arg5: memref<2x1024xf32, #tpu.memory_space<vmem>>) attributes {dimension_semantics = [#tpu.dimension_semantics<parallel>], iteration_bounds = array<i64: 1>, scalar_prefetch = 0 : i64, scratch_operands = 1 : i64, tpu.core_type = #tpu.core_type<tc>, window_params = [{transform_indices = @transform_0, window_bounds = array<i64: 2, 1024>}, {transform_indices = @transform_1, window_bounds = array<i64: 2, 1024>}, {pipeline_mode = #tpu.pipeline_mode<synchronous>, transform_indices = @transform_2, window_bounds = array<i64: 1, 1007>}, {transform_indices = @transform_3, window_bounds = array<i64: 1, 8, 128>}]} {
    %c0 = arith.constant 0 : index
    %c0_0 = arith.constant 0 : index
    %0 = vector.load %arg1[%c0, %c0_0] : memref<2x1024xf32, #tpu.memory_space<vmem>>, vector<2x1024xf32>
    %c0_1 = arith.constant 0 : index
    %c0_2 = arith.constant 0 : index
    %1 = vector.load %arg2[%c0_1, %c0_2] : memref<2x1024xf32, #tpu.memory_space<vmem>>, vector<2x1024xf32>
    %2 = arith.subf %0, %1 : vector<2x1024xf32>
    %c0_3 = arith.constant 0 : index
    %c0_4 = arith.constant 0 : index
    %3 = vector.load %arg5[%c0_3, %c0_4] : memref<2x1024xf32, #tpu.memory_space<vmem>>, vector<2x1024xf32>
    tpu.vector_store %arg5[%c0_3, %c0_4], %2 {strides = array<i32>} : memref<2x1024xf32, #tpu.memory_space<vmem>>, vector<2x1024xf32>,
    %c0_5 = arith.constant 0 : index
    %c0_6 = arith.constant 0 : index
    %4 = vector.load %arg5[%c0_5, %c0_6] : memref<2x1024xf32, #tpu.memory_space<vmem>>, vector<2x1007xf32>
    %c0_7 = arith.constant 0 : index
    %c1 = arith.constant 1 : index
    %5 = vector.load %arg5[%c0_7, %c1] : memref<2x1024xf32, #tpu.memory_space<vmem>>, vector<2x1007xf32>
    %c0_8 = arith.constant 0 : index
    %c16 = arith.constant 16 : index
    %6 = vector.load %arg5[%c0_8, %c16] : memref<2x1024xf32, #tpu.memory_space<vmem>>, vector<2x1007xf32>
    %c0_9 = arith.constant 0 : index
    %c17 = arith.constant 17 : index
    %7 = vector.load %arg5[%c0_9, %c17] : memref<2x1024xf32, #tpu.memory_space<vmem>>, vector<2x1007xf32>
    %8 = arith.addf %5, %7 : vector<2x1007xf32>
    %9 = arith.addf %4, %6 : vector<2x1007xf32>
    %10 = arith.subf %8, %9 : vector<2x1007xf32>
    %11 = arith.addf %6, %7 : vector<2x1007xf32>
    %12 = arith.addf %4, %5 : vector<2x1007xf32>
    %13 = arith.subf %11, %12 : vector<2x1007xf32>
    %14 = arith.addf %4, %7 : vector<2x1007xf32>
    %15 = arith.addf %5, %6 : vector<2x1007xf32>
    %16 = arith.subf %14, %15 : vector<2x1007xf32>
    %17 = arith.mulf %10, %10 : vector<2x1007xf32>
    %18 = arith.mulf %13, %13 : vector<2x1007xf32>
    %19 = arith.addf %17, %18 : vector<2x1007xf32>
    %20 = arith.mulf %16, %16 : vector<2x1007xf32>
    %21 = arith.addf %19, %20 : vector<2x1007xf32>
    %c0_10 = arith.constant 0 : index
    %c0_11 = arith.constant 0 : index
    %22 = vector.load %arg3[%c0_10, %c0_11] : memref<1x1007xf32, #tpu.memory_space<vmem>>, vector<1x1007xf32>
    %23 = vector.broadcast %22 : vector<1x1007xf32> to vector<2x1007xf32>
    %24 = arith.mulf %21, %23 : vector<2x1007xf32>
    %25 = vector.shape_cast %24 : vector<2x1007xf32> to vector<1x2x1007xf32>
    %cst = arith.constant dense<0.000000e+00> : vector<1xf32>
    %26 = vector.multi_reduction <add>, %25, %cst [1, 2] : vector<1x2x1007xf32> to vector<1xf32>
    %27 = vector.shape_cast %26 : vector<1xf32> to vector<1x1x1xf32>
    %28 = vector.extract %27[0, 0, 0] : f32 from vector<1x1x1xf32>
    %cst_12 = arith.constant 0.000000e+00 : f32
    %29 = vector.broadcast %cst_12 : f32 to vector<1x8x128xf32>
    %30 = vector.broadcast %28 : f32 to vector<1x8x128xf32>
    %31 = arith.addf %29, %30 : vector<1x8x128xf32>
    %c0_13 = arith.constant 0 : index
    %c0_14 = arith.constant 0 : index
    %c0_15 = arith.constant 0 : index
    %32 = vector.load %arg4[%c0_13, %c0_14, %c0_15] : memref<1x8x128xf32, #tpu.memory_space<vmem>>, vector<1x8x128xf32>
    tpu.vector_store %arg4[%c0_13, %c0_14, %c0_15], %31 {strides = array<i32>} : memref<1x8x128xf32, #tpu.memory_space<vmem>>, vector<1x8x128xf32>,
    return
  }
  func.func @transform_0(%arg0: i32) -> (i32, i32) {
    %c0_i32 = arith.constant 0 : i32
    %c0_i32_0 = arith.constant 0 : i32
    return %arg0, %c0_i32 : i32, i32
  }
  func.func @transform_1(%arg0: i32) -> (i32, i32) {
    %c0_i32 = arith.constant 0 : i32
    %c0_i32_0 = arith.constant 0 : i32
    return %arg0, %c0_i32 : i32, i32
  }
  func.func @transform_2(%arg0: i32) -> (i32, i32) {
    %c0_i32 = arith.constant 0 : i32
    %c0_i32_0 = arith.constant 0 : i32
    %c0_i32_1 = arith.constant 0 : i32
    return %c0_i32, %c0_i32_0 : i32, i32
  }
  func.func @transform_3(%arg0: i32) -> (i32, i32, i32) {
    %c0_i32 = arith.constant 0 : i32
    %c0_i32_0 = arith.constant 0 : i32
    %c0_i32_1 = arith.constant 0 : i32
    return %arg0, %c0_i32, %c0_i32_0 : i32, i32, i32
  }
}

</mosaic_0001>

<llo_original>
// kernel: tpu_custom_call.1
$region0: #{tpu_custom_call.1}
  #allocation0 [shape = 'u32[]', space=smem, size = 0x4, offset = 0x4, fixed_abs, tag = 'smem constant byte address 0x4 - core index']
  #allocation1 [shape = 'u32[144,128]{1,0:T(1,128)}', space=vmem, size = 0x12000, scoped, tag = 'internal scratch']
  #allocation2 [shape = 'f32[2,1024]{1,0:T(2,128)}', space=vmem, size = 0x2000, scoped, tag = 'scratch operand']
  %s0 = inlined_call_operand.hbm [shape: f32[2,1024], index: 0, kind: input, shape index: {}]
  %s1 = inlined_call_operand.hbm [shape: f32[2,1024], index: 1, kind: input, shape index: {}]
  %s2 = inlined_call_operand.hbm [shape: f32[1,1007], index: 2, kind: input, shape index: {}]
  %s3 = inlined_call_operand.hbm [shape: f32[1,8,128], index: 3, kind: output, shape index: {}]
  %s4 = sld [smem:[#allocation0]]
  $region34: #{tpu_custom_call.1} parent=0
    _
  %s6 = ssub.s32 1, %s4
  %s7 = scalar_select 0, %s6, %s4
  $region1: #{tpu_custom_call.1} parent=0
    #allocation3 [shape = 'u8[8192]{0}', space=vmem, size = 0x2000, scoped, tag = 'input window, operand 0, single buffered']
    #allocation4 [shape = 's32[1]{0}', space=sflag, size = 0x4, scoped, tag = 'scoped memory for tpu_custom_call.1']
    #allocation5 [shape = 's32[1]{0}', space=sflag, size = 0x4, scoped, tag = 'scoped memory for tpu_custom_call.1']
    #allocation6 [shape = 'u8[8192]{0}', space=vmem, size = 0x2000, scoped, tag = 'input window, operand 1, single buffered']
    #allocation7 [shape = 's32[1]{0}', space=sflag, size = 0x4, scoped, tag = 'scoped memory for tpu_custom_call.1']
    #allocation8 [shape = 'u8[4096]{0}', space=vmem, size = 0x1000, scoped, tag = 'input window, operand 2, single buffered']
    #allocation9 [shape = 'u8[4096]{0}', space=vmem, size = 0x1000, scoped, tag = 'output window, operand 0, single buffered']
    %8 = vsyncpa [#allocation4], 0
    %9 = vsyncpa [#allocation7], 0
    %10 = vsyncpa [#allocation5], 0
    // Predicated region
    $region2: #{tpu_custom_call.1} parent=1 // pred_check
      _
    $region3: #{tpu_custom_call.1} parent=1 // pred_check_branch
      %12 = sbr.rel (0) target = $region5
    $region4: #{tpu_custom_call.1} parent=1 // pred_region
      %s14 = ssub.s32 256, 256
      %15 = vsyncadd [#allocation4], %s14
      %s17 = sshll.u32 [#allocation3], 4
      %s18 = int_to_ptr.vmem [resolvable:$true] %s17
      %20 = dma.hbm_to_vmem [thread:$0]  %s0, 256, %s18, [#allocation4]
    $region5: #{tpu_custom_call.1} parent=1 // pred_fallthru
      _
    // Predicated region
    $region6: #{tpu_custom_call.1} parent=1 // pred_check
      _
    $region7: #{tpu_custom_call.1} parent=1 // pred_check_branch
      %22 = sbr.rel (0) target = $region9
    $region8: #{tpu_custom_call.1} parent=1 // pred_region
      %s24 = ssub.s32 256, 256
      %25 = vsyncadd [#allocation7], %s24
      %s27 = sshll.u32 [#allocation6], 4
      %s28 = int_to_ptr.vmem [resolvable:$true] %s27
      %30 = dma.hbm_to_vmem [thread:$0]  %s1, 256, %s28, [#allocation7]
    $region9: #{tpu_custom_call.1} parent=1 // pred_fallthru
      _
    // Predicated region
    $region10: #{tpu_custom_call.1} parent=1 // pred_check
      _
    $region11: #{tpu_custom_call.1} parent=1 // pred_check_branch
      %32 = sbr.rel (0) target = $region13
    $region12: #{tpu_custom_call.1} parent=1 // pred_region
      %s34 = ssub.s32 128, 128
      %35 = vsyncadd [#allocation7], %s34
      %s37 = sshll.u32 [#allocation8], 4
      %s38 = int_to_ptr.vmem [resolvable:$true] %s37
      %40 = dma.hbm_to_vmem [thread:$0]  %s2, 128, %s38, [#allocation7]
    $region13: #{tpu_custom_call.1} parent=1 // pred_fallthru
      _
    // Predicated region
    $region14: #{tpu_custom_call.1} parent=1 // pred_check
      _
    $region15: #{tpu_custom_call.1} parent=1 // pred_check_branch
      %42 = sbr.rel (0) target = $region17
    $region16: #{tpu_custom_call.1} parent=1 // pred_region
      %43 = dma.done [#allocation4], 256
    $region17: #{tpu_custom_call.1} parent=1 // pred_fallthru
      _
    // Predicated region
    $region18: #{tpu_custom_call.1} parent=1 // pred_check
      _
    $region19: #{tpu_custom_call.1} parent=1 // pred_check_branch
      %45 = sbr.rel (0) target = $region21
    $region20: #{tpu_custom_call.1} parent=1 // pred_region
      %46 = dma.done [#allocation7], 256
    $region21: #{tpu_custom_call.1} parent=1 // pred_fallthru
      _
    // Predicated region
    $region22: #{tpu_custom_call.1} parent=1 // pred_check
      _
    $region23: #{tpu_custom_call.1} parent=1 // pred_check_branch
      %48 = sbr.rel (0) target = $region25
    $region24: #{tpu_custom_call.1} parent=1 // pred_region
      %49 = dma.done [#allocation7], 128
    $region25: #{tpu_custom_call.1} parent=1 // pred_fallthru
      _
    %v50 = vld [vmem:[#allocation3] sm:$0xff]
    %v51 = vld [vmem:[#allocation3 + $0x8] sm:$0xff]
    %v52 = vld [vmem:[#allocation6] sm:$0xff]
    %v53 = vld [vmem:[#allocation6 + $0x8] sm:$0xff]
    %v54 = vsub.f32 %v50, %v52
    %v55 = vsub.f32 %v51, %v53
    %56 = vst [vmem:[#allocation2] sm:$0xff] %v54
    %57 = vst [vmem:[#allocation2 + $0x8] sm:$0xff] %v55
    %v58 = vld [vmem:[#allocation2] sm:$0xff]
    %v59 = vld [vmem:[#allocation2 + $0x8] sm:$0xff]
    %62 = vrot.lane.b32.xlu0 %v58, 112
    %v63 = vpop.permute.xlu0 %62
    %64 = vrot.lane.b32.xlu0 %v59, 112
    %v65 = vpop.permute.xlu0 %64
    %v66 = vrot.slane %v63, 2
    %v67 = vrot.slane %v65, 2
    %vm68 = vcmask 1045504
    %v69 = vsel %vm68, %v66, %v67
    %vm70 = vcmask 916480
    %v71 = vsel %vm70, %v63, %v69
    %v72 = vsel %vm70, %v65, %v67
    %v75 = vadd.f32 %v58, %v71
    %v76 = vadd.f32 %v59, %v72
    %79 = vrot.lane.b32.xlu0 %v75, 1
    %v80 = vpop.permute.xlu0 %79
    %81 = vrot.lane.b32.xlu0 %v76, 1
    %v82 = vpop.permute.xlu0 %81
    %v83 = vrot.slane %v80, 6
    %v84 = vrot.slane %v82, 6
    %vm85 = vcmask 7168
    %v86 = vsel %vm85, %v83, %v80
    %vm87 = vcmask 1041408
    %v88 = vsel %vm87, %v83, %v84
    %v89 = vsel %vm85, %v88, %v82
    %v92 = vsub.f32 %v75, %v86
    %v93 = vsub.f32 %v76, %v89
    %94 = vrot.lane.b32.xlu0 %v58, 127
    %v95 = vpop.permute.xlu0 %94
    %96 = vrot.lane.b32.xlu0 %v59, 127
    %v97 = vpop.permute.xlu0 %96
    %v98 = vrot.slane %v95, 2
    %v99 = vrot.slane %v97, 2
    %v100 = vsel %vm68, %v98, %v99
    %vm101 = vcmask 1039360
    %v102 = vsel %vm101, %v95, %v100
    %v103 = vsel %vm101, %v97, %v99
    %v106 = vadd.f32 %v58, %v102
    %v107 = vadd.f32 %v59, %v103
    %110 = vrot.lane.b32.xlu0 %v106, 16
    %v111 = vpop.permute.xlu0 %110
    %112 = vrot.lane.b32.xlu0 %v107, 16
    %v113 = vpop.permute.xlu0 %112
    %v114 = vrot.slane %v111, 6
    %v115 = vrot.slane %v113, 6
    %vm116 = vcmask 130048
    %v117 = vsel %vm116, %v114, %v111
    %v118 = vsel %vm87, %v114, %v115
    %v119 = vsel %vm116, %v118, %v113
    %v122 = vsub.f32 %v106, %v117
    %v123 = vsub.f32 %v107, %v119
    %124 = vrot.lane.b32.xlu0 %v58, 111
    %v125 = vpop.permute.xlu0 %124
    %126 = vrot.lane.b32.xlu0 %v59, 111
    %v127 = vpop.permute.xlu0 %126
    %v128 = vrot.slane %v125, 2
    %v129 = vrot.slane %v127, 2
    %v130 = vsel %vm68, %v128, %v129
    %vm131 = vcmask 908288
    %v132 = vsel %vm131, %v125, %v130
    %v133 = vsel %vm131, %v127, %v129
    %v136 = vadd.f32 %v58, %v132
    %v137 = vadd.f32 %v59, %v133
    %138 = vrot.lane.b32.xlu0 %v58, 113
    %v139 = vpop.permute.xlu0 %138
    %140 = vrot.lane.b32.xlu0 %v59, 113
    %v141 = vpop.permute.xlu0 %140
    %v142 = vrot.slane %v139, 2
    %v143 = vrot.slane %v141, 2
    %v144 = vsel %vm68, %v142, %v143
    %vm145 = vcmask 924672
    %v146 = vsel %vm145, %v139, %v144
    %v147 = vsel %vm145, %v141, %v143
    %v150 = vadd.f32 %v58, %v146
    %v151 = vadd.f32 %v59, %v147
    %154 = vrot.lane.b32.xlu0 %v150, 127
    %v155 = vpop.permute.xlu0 %154
    %156 = vrot.lane.b32.xlu0 %v151, 127
    %v157 = vpop.permute.xlu0 %156
    %v158 = vrot.slane %v155, 2
    %v159 = vrot.slane %v157, 2
    %v160 = vsel %vm68, %v158, %v159
    %v161 = vsel %vm101, %v155, %v160
    %v162 = vsel %vm101, %v157, %v159
    %v165 = vsub.f32 %v136, %v161
    %v166 = vsub.f32 %v137, %v162
    %v167 = vmul.f32 %v92, %v92
    %v168 = vmul.f32 %v93, %v93
    %v169 = vmul.f32 %v122, %v122
    %v170 = vmul.f32 %v123, %v123
    %173 = vrot.lane.b32.xlu0 %v169, 113
    %v174 = vpop.permute.xlu0 %173
    %175 = vrot.lane.b32.xlu0 %v170, 113
    %v176 = vpop.permute.xlu0 %175
    %v177 = vrot.slane %v174, 2
    %v178 = vrot.slane %v176, 2
    %v179 = vsel %vm68, %v177, %v178
    %v180 = vsel %vm145, %v174, %v179
    %v181 = vsel %vm145, %v176, %v178
    %v184 = vadd.f32 %v167, %v180
    %v185 = vadd.f32 %v168, %v181
    %v186 = vmul.f32 %v165, %v165
    %v187 = vmul.f32 %v166, %v166
    %190 = vrot.lane.b32.xlu0 %v186, 1
    %v191 = vpop.permute.xlu0 %190
    %192 = vrot.lane.b32.xlu0 %v187, 1
    %v193 = vpop.permute.xlu0 %192
    %v194 = vrot.slane %v191, 6
    %v195 = vrot.slane %v193, 6
    %v196 = vsel %vm85, %v194, %v191
    %v197 = vsel %vm87, %v194, %v195
    %v198 = vsel %vm85, %v197, %v193
    %v201 = vadd.f32 %v184, %v196
    %v202 = vadd.f32 %v185, %v198
    %v203 = vld [vmem:[#allocation8] sm:$0xff]
    %v205 = vlaneseq
    %v206 = vshrl.u32 %v205, 7
    %v207 = vsub.s32 0, %v206
    %v208 = vrot.slane %v203, %v207
    %v209 = vlaneseq
    %v210 = vshrl.u32 %v209, 7
    %v211 = vsub.s32 1, %v210
    %v212 = vrot.slane %v203, %v211
    %v213 = vlaneseq
    %v214 = vshrl.u32 %v213, 7
    %v215 = vsub.s32 2, %v214
    %v216 = vrot.slane %v203, %v215
    %v217 = vlaneseq
    %v218 = vshrl.u32 %v217, 7
    %v219 = vsub.s32 3, %v218
    %v220 = vrot.slane %v203, %v219
    %v221 = vlaneseq
    %v222 = vshrl.u32 %v221, 7
    %v223 = vsub.s32 4, %v222
    %v224 = vrot.slane %v203, %v223
    %v225 = vlaneseq
    %v226 = vshrl.u32 %v225, 7
    %v227 = vsub.s32 5, %v226
    %v228 = vrot.slane %v203, %v227
    %v229 = vlaneseq
    %v230 = vshrl.u32 %v229, 7
    %v231 = vsub.s32 6, %v230
    %v232 = vrot.slane %v203, %v231
    %v233 = vlaneseq
    %v234 = vshrl.u32 %v233, 7
    %v235 = vsub.s32 7, %v234
    %v236 = vrot.slane %v203, %v235
    %v237 = vcombine.low %v208, %v212
    %v238 = vcombine.low %v216, %v220
    %v240 = vunpack.c.l.s4 1983009808
    %v241 = vunpack.c.0.s8 %v240
    %v242 = vlaneseq
    %v243 = vshrl.u32 %v242, 7
    %v244 = vsub.s32 %v241, %v243
    %v245 = vrot.slane %v237, %v244
    %v247 = vunpack.c.l.s4 1983009808
    %v248 = vunpack.c.0.s8 %v247
    %v249 = vlaneseq
    %v250 = vshrl.u32 %v249, 7
    %v251 = vsub.s32 %v248, %v250
    %v252 = vrot.slane %v238, %v251
    %v253 = vcombine.low %v245, %v252
    %v254 = vcombine.low %v224, %v228
    %v255 = vcombine.low %v232, %v236
    %v257 = vunpack.c.l.s4 1983009808
    %v258 = vunpack.c.0.s8 %v257
    %v259 = vlaneseq
    %v260 = vshrl.u32 %v259, 7
    %v261 = vsub.s32 %v258, %v260
    %v262 = vrot.slane %v254, %v261
    %v264 = vunpack.c.l.s4 1983009808
    %v265 = vunpack.c.0.s8 %v264
    %v266 = vlaneseq
    %v267 = vshrl.u32 %v266, 7
    %v268 = vsub.s32 %v265, %v267
    %v269 = vrot.slane %v255, %v268
    %v270 = vcombine.low %v262, %v269
    %271 = vrot.lane.b32.xlu0 %v253, 1
    %v272 = vpop.permute.xlu0 %271
    %273 = vrot.lane.b32.xlu0 %v270, 1
    %v274 = vpop.permute.xlu0 %273
    %v275 = vrot.slane %v272, 6
    %v276 = vrot.slane %v274, 6
    %v277 = vsel %vm85, %v275, %v272
    %v278 = vsel %vm87, %v275, %v276
    %v279 = vsel %vm85, %v278, %v274
    %v282 = vmul.f32 %v201, %v277
    %v283 = vmul.f32 %v202, %v279
    %v286 = vcombine.high %v282, %v282
    %v288 = vunpack.c.l.s4 1983009808
    %v289 = vunpack.c.0.s8 %v288
    %v290 = vlaneseq
    %v291 = vshrl.u32 %v290, 7
    %v292 = vsub.s32 %v289, %v291
    %v293 = vrot.slane %v282, %v292
    %v295 = vunpack.c.l.s4 1983009808
    %v296 = vunpack.c.0.s8 %v295
    %v297 = vlaneseq
    %v298 = vshrl.u32 %v297, 7
    %v299 = vsub.s32 %v296, %v298
    %v300 = vrot.slane %v286, %v299
    %v301 = vcombine.high %v293, %v293
    %v302 = vcombine.high %v300, %v300
    %v303 = vcombine.high %v283, %v283
    %v305 = vunpack.c.l.s4 1983009808
    %v306 = vunpack.c.0.s8 %v305
    %v307 = vlaneseq
    %v308 = vshrl.u32 %v307, 7
    %v309 = vsub.s32 %v306, %v308
    %v310 = vrot.slane %v283, %v309
    %v312 = vunpack.c.l.s4 1983009808
    %v313 = vunpack.c.0.s8 %v312
    %v314 = vlaneseq
    %v315 = vshrl.u32 %v314, 7
    %v316 = vsub.s32 %v313, %v315
    %v317 = vrot.slane %v303, %v316
    %v318 = vcombine.high %v310, %v310
    %v319 = vcombine.high %v317, %v317
    %320 = vrot.lane.b32.xlu0 %v293, 127
    %v321 = vpop.permute.xlu0 %320
    %322 = vrot.lane.b32.xlu0 %v301, 127
    %v323 = vpop.permute.xlu0 %322
    %324 = vrot.lane.b32.xlu0 %v300, 127
    %v325 = vpop.permute.xlu0 %324
    %326 = vrot.lane.b32.xlu0 %v302, 127
    %v327 = vpop.permute.xlu0 %326
    %328 = vrot.lane.b32.xlu0 %v310, 127
    %v329 = vpop.permute.xlu0 %328
    %330 = vrot.lane.b32.xlu0 %v318, 127
    %v331 = vpop.permute.xlu0 %330
    %332 = vrot.lane.b32.xlu0 %v317, 127
    %v333 = vpop.permute.xlu0 %332
    %334 = vrot.lane.b32.xlu0 %v319, 127
    %v335 = vpop.permute.xlu0 %334
    %v336 = vsel %vm101, %v321, %v323
    %v337 = vsel %vm101, %v323, %v325
    %v338 = vsel %vm101, %v325, %v327
    %v339 = vsel %vm101, %v327, %v329
    %v340 = vsel %vm101, %v329, %v331
    %v341 = vsel %vm101, %v331, %v333
    %v342 = vsel %vm101, %v333, %v335
    %v351 = vsel %vm87, %v336, 0.0
    %v352 = vsel %vm87, %v337, 0.0
    %v353 = vadd.f32 %v351, %v352
    %v354 = vsel %vm87, %v338, 0.0
    %v355 = vadd.f32 %v353, %v354
    %v356 = vsel %vm87, %v339, 0.0
    %v357 = vadd.f32 %v355, %v356
    %v358 = vsel %vm87, %v340, 0.0
    %v359 = vadd.f32 %v357, %v358
    %v360 = vsel %vm87, %v341, 0.0
    %v361 = vadd.f32 %v359, %v360
    %v362 = vsel %vm87, %v342, 0.0
    %v363 = vadd.f32 %v361, %v362
    %vm364 = vcmask 902144
    %v365 = vsel %vm364, %v335, 0.0
    %v366 = vadd.f32 %v363, %v365
    %367 = vadd.xlane.f32.xlu0 %v366
    %v368 = vpop.xlane.xlu0 %367
    %v369 = vrot.slane %v368, 4
    %v370 = vadd.f32 %v368, %v369
    %v371 = vrot.slane %v370, 2
    %v372 = vadd.f32 %v370, %v371
    %v373 = vrot.slane %v372, 1
    %v374 = vadd.f32 %v372, %v373
    %s375 = vtos %v374
    %v376 = vstv %s375
    %v377 = vadd.f32 %v376, 0.0
    %378 = vst [vmem:[#allocation9] sm:$0xff] %v377
    // Predicated region
    $region26: #{tpu_custom_call.1} parent=1 // pred_check
      _
    $region27: #{tpu_custom_call.1} parent=1 // pred_check_branch
      %380 = sbr.rel (0) target = $region29
    $region28: #{tpu_custom_call.1} parent=1 // pred_region
      %s382 = ssub.s32 128, 128
      %383 = vsyncadd [#allocation5], %s382
      %s385 = sshll.u32 [#allocation9], 4
      %s386 = int_to_ptr.vmem [resolvable:$true] %s385
      %388 = dma.vmem_to_hbm [thread:$0]  %s386, 128, %s3, [#allocation5]
    $region29: #{tpu_custom_call.1} parent=1 // pred_fallthru
      _
    // Predicated region
    $region30: #{tpu_custom_call.1} parent=1 // pred_check
      _
    $region31: #{tpu_custom_call.1} parent=1 // pred_check_branch
      %390 = sbr.rel (0) target = $region33
    $region32: #{tpu_custom_call.1} parent=1 // pred_region
      %391 = dma.done [#allocation5], 128
    $region33: #{tpu_custom_call.1} parent=1 // pred_fallthru
      _
    %392 = vsyncpa [#allocation4], 1
    %393 = vsyncpa [#allocation7], 1
    %394 = vsyncpa [#allocation5], 1

</llo_original>
